<compile_context>
chip_gen: v7x
topology: tpu7x:2x2x1
jax: 0.10.0
libtpu: 0.0.40
codegen_flags: <defaults>
</compile_context>

<pallas_src>
import numpy as np
import jax
import jax.numpy as jnp
from jax.experimental import pallas as pl
from jax.experimental.pallas import tpu as pltpu


def _make_kernel(spg, mp, inv_n, eps):
    inv_n = float(inv_n)
    eps = float(eps)

    def kernel(x_ref, g_ref, b_ref, w_ref, p_ref, o_ref, pooled_ref):
        # x_ref:  (spg, C*D, M)      g_ref/b_ref: (C*D, 1)
        # w_ref:  (Co*D, C*D)        p_ref: (M, Mp)
        # o_ref:  (1, Co*D, spg*Mp)  pooled_ref (scratch): (C*D, spg*Mp)
        gam = g_ref[...]                                   # (CD, 1)
        bet = b_ref[...]                                   # (CD, 1)

        for n in range(spg):                               # static unroll (tiny)
            x = x_ref[n]                                   # (CD, M)

            # --- GroupNorm(num_groups=1): one-pass per-sample stats ---
            s = jnp.sum(x)
            ss = jnp.sum(x * x)
            mean = s * inv_n
            var = jnp.maximum(ss * inv_n - mean * mean, jnp.float32(0.0))
            rstd = jax.lax.rsqrt(var + eps)

            # fold gamma*rstd and (beta - mean*gamma*rstd) into one FMA per element
            scale = gam * rstd                             # (CD, 1)
            shift = bet - mean * scale                     # (CD, 1)

            # --- normalize + affine + ReLU ---
            xr = jnp.maximum(x * scale + shift, jnp.float32(0.0))   # (CD, M)

            # --- AvgPool (1,2,2): one MXU matmul, lane-slab write into scratch ---
            pooled_ref[:, n * mp:(n + 1) * mp] = jnp.dot(
                xr, p_ref[...], preferred_element_type=jnp.float32)  # (CD, Mp)

        # --- Conv3d (3,1,1), pad (1,0,0), no bias: banded depth-conv matmul over
        #     the lane-stacked samples -> single >=128-lane unmasked output store.
        o_ref[0] = jnp.dot(w_ref[...], pooled_ref[...],
                           preferred_element_type=jnp.float32)       # (CoD, spg*Mp)

    return kernel


def transition_forward(x, gn_weight, gn_bias, conv_w):
    """x: (N, C, D, H, W) f32. conv_w: (Co, C, 3, 1, 1). Returns (N, Co, D, H//2, W//2)."""
    N, C, D, H, W = x.shape
    Co = conv_w.shape[0]
    assert H % 2 == 0 and W % 2 == 0, "AvgPool3d((1,2,2)) expects even H, W"
    M = H * W
    Hp, Wp = H // 2, W // 2
    Mp = Hp * Wp
    CD = C * D
    CoD = Co * D

    # samples per grid step: merge samples until the output block is >= 128 lanes
    # (lane-dense unmasked stores; fewer serial grid steps on 1-TC v5e/v6e).
    spg = 1
    while spg < N and spg * Mp < 128 and N % (2 * spg) == 0:
        spg *= 2
    G = N // spg
    L = spg * Mp

    # free reshape of contiguous NCDHW: rows = (c, d), lanes = h*W + w
    xf = x.reshape(N, CD, M).astype(jnp.float32)

    # per-row (channel-expanded) affine params: row c*D + d gets gamma[c], beta[c]
    g_exp = jnp.repeat(gn_weight.astype(jnp.float32), D).reshape(CD, 1)
    b_exp = jnp.repeat(gn_bias.astype(jnp.float32), D).reshape(CD, 1)

    # banded depth-conv weights: Wbig[o*D + d, c*D + e] = w[o, c, e - d + 1] if |e-d|<=1
    # (structural index/mask arrays are host-side numpy constants)
    diff_np = np.arange(D)[None, :] - np.arange(D)[:, None]       # (D, D), e - d
    band = jnp.asarray((np.abs(diff_np) <= 1).astype(np.float32))  # (D, D)
    tap_np = np.clip(diff_np + 1, 0, 2)                            # (D, D) in {0,1,2}
    w3 = conv_w[:, :, :, 0, 0].astype(jnp.float32)                 # (Co, C, 3)
    wblk = w3[:, :, tap_np] * band[None, None]                     # (Co, C, D, D)
    wbig = jnp.transpose(wblk, (0, 2, 1, 3)).reshape(CoD, CD)

    # per-depth 2x2 average-pooling matrix P: (M, Mp), built host-side (no scatters
    # in the traced graph), 0.25 at the 4 contributing taps of each output pixel.
    P_np = np.zeros((M, Mp), np.float32)
    ii = np.arange(Hp)
    jj = np.arange(Wp)
    cols = (ii[:, None] * Wp + jj[None, :]).reshape(-1)
    for di in (0, 1):
        for dj in (0, 1):
            rows = ((2 * ii[:, None] + di) * W + (2 * jj[None, :] + dj)).reshape(-1)
            P_np[rows, cols] += 0.25
    P = jnp.asarray(P_np)

    kernel = _make_kernel(spg, Mp, 1.0 / (CD * M), 1e-5)

    out_flat = pl.pallas_call(
        kernel,
        out_shape=jax.ShapeDtypeStruct((G, CoD, L), jnp.float32),
        grid_spec=pltpu.PrefetchScalarGridSpec(
            num_scalar_prefetch=0,
            grid=(G,),
            in_specs=[
                pl.BlockSpec((spg, CD, M), lambda g: (g, 0, 0)),
                pl.BlockSpec((CD, 1), lambda g: (0, 0)),
                pl.BlockSpec((CD, 1), lambda g: (0, 0)),
                pl.BlockSpec((CoD, CD), lambda g: (0, 0)),
                pl.BlockSpec((M, Mp), lambda g: (0, 0)),
            ],
            out_specs=pl.BlockSpec((1, CoD, L), lambda g: (g, 0, 0)),
            scratch_shapes=[pltpu.VMEM((CD, L), jnp.float32)],
        ),
        compiler_params=pltpu.CompilerParams(
            dimension_semantics=("parallel",),
            vmem_limit_bytes=32 * 1024 * 1024,
        ),
    )(xf, g_exp, b_exp, wbig, P)

    # un-stack lane-packed samples: (G, CoD, spg*Mp) -> (N, Co, D, Hp, Wp)
    out = out_flat.reshape(G, Co, D, spg, Hp, Wp)
    out = jnp.transpose(out, (0, 3, 1, 2, 4, 5)).reshape(N, Co, D, Hp, Wp)
    return out


def transition_reference(x, gn_weight, gn_bias, conv_w):
    """Pure-JAX reference matching the PyTorch module semantics."""
    N, C, D, H, W = x.shape
    mean = x.mean(axis=(1, 2, 3, 4), keepdims=True)
    var = ((x - mean) ** 2).mean(axis=(1, 2, 3, 4), keepdims=True)
    xn = (x - mean) / jnp.sqrt(var + 1e-5)
    xn = xn * gn_weight[None, :, None, None, None] + gn_bias[None, :, None, None, None]
    xr = jnp.maximum(xn, 0.0)
    xp = jnp.pad(xr, ((0, 0), (0, 0), (1, 1), (0, 0), (0, 0)))
    w = conv_w[:, :, :, 0, 0]                                   # (Co, C, 3)
    y = sum(jnp.einsum('oc,ncdhw->nodhw', w[:, :, k], xp[:, :, k:k + D])
            for k in range(3))
    Co = y.shape[1]
    out = y.reshape(N, Co, D, H // 2, 2, W // 2, 2).mean(axis=(4, 6))
    return out


if __name__ == "__main__":
    key = jax.random.PRNGKey(0)
    k1, k2, k3, k4 = jax.random.split(key, 4)

    N, C, Co, D, H, W = 2, 4, 8, 8, 16, 16
    x = jax.random.normal(k1, (N, C, D, H, W), dtype=jnp.float32)
    gn_weight = 1.0 + 0.1 * jax.random.normal(k2, (C,), dtype=jnp.float32)
    gn_bias = 0.1 * jax.random.normal(k3, (C,), dtype=jnp.float32)
    conv_w = 0.1 * jax.random.normal(k4, (Co, C, 3, 1, 1), dtype=jnp.float32)

    out = transition_forward(x, gn_weight, gn_bias, conv_w)
    out = jax.block_until_ready(out)

    ref = transition_reference(x, gn_weight, gn_bias, conv_w)
    assert out.shape == (N, Co, D, H // 2, W // 2), out.shape
    assert jnp.allclose(out, ref, rtol=1e-4, atol=1e-4), float(
        jnp.max(jnp.abs(out - ref)))

    print("KERNEL_OK")
</pallas_src>

<mosaic_0001>
module attributes {stable_mosaic.version = 11 : i64} {
  func.func @kernel(%arg0: i32, %arg1: memref<2x32x256xf32, #tpu.memory_space<vmem>>, %arg2: memref<32x1xf32, #tpu.memory_space<vmem>>, %arg3: memref<32x1xf32, #tpu.memory_space<vmem>>, %arg4: memref<64x32xf32, #tpu.memory_space<vmem>>, %arg5: memref<256x64xf32, #tpu.memory_space<vmem>>, %arg6: memref<1x64x128xf32, #tpu.memory_space<vmem>>, %arg7: memref<32x128xf32, #tpu.memory_space<vmem>>) attributes {dimension_semantics = [#tpu.dimension_semantics<parallel>], iteration_bounds = array<i64: 1>, scalar_prefetch = 0 : i64, scratch_operands = 1 : i64, tpu.core_type = #tpu.core_type<tc>, window_params = [{transform_indices = @transform_0, window_bounds = array<i64: 2, 32, 256>}, {pipeline_mode = #tpu.pipeline_mode<synchronous>, transform_indices = @transform_1, window_bounds = array<i64: 32, 1>}, {pipeline_mode = #tpu.pipeline_mode<synchronous>, transform_indices = @transform_2, window_bounds = array<i64: 32, 1>}, {pipeline_mode = #tpu.pipeline_mode<synchronous>, transform_indices = @transform_3, window_bounds = array<i64: 64, 32>}, {pipeline_mode = #tpu.pipeline_mode<synchronous>, transform_indices = @transform_4, window_bounds = array<i64: 256, 64>}, {transform_indices = @transform_5, window_bounds = array<i64: 1, 64, 128>}]} {
    %c0 = arith.constant 0 : index
    %c0_0 = arith.constant 0 : index
    %0 = vector.load %arg2[%c0, %c0_0] : memref<32x1xf32, #tpu.memory_space<vmem>>, vector<32x1xf32>
    %c0_1 = arith.constant 0 : index
    %c0_2 = arith.constant 0 : index
    %1 = vector.load %arg3[%c0_1, %c0_2] : memref<32x1xf32, #tpu.memory_space<vmem>>, vector<32x1xf32>
    %c0_3 = arith.constant 0 : index
    %c0_4 = arith.constant 0 : index
    %c0_5 = arith.constant 0 : index
    %2 = vector.load %arg1[%c0_3, %c0_4, %c0_5] : memref<2x32x256xf32, #tpu.memory_space<vmem>>, vector<1x32x256xf32>
    %3 = vector.shape_cast %2 : vector<1x32x256xf32> to vector<32x256xf32>
    %4 = vector.shape_cast %3 : vector<32x256xf32> to vector<1x32x256xf32>
    %cst = arith.constant dense<0.000000e+00> : vector<1xf32>
    %5 = vector.multi_reduction <add>, %4, %cst [1, 2] : vector<1x32x256xf32> to vector<1xf32>
    %6 = vector.shape_cast %5 : vector<1xf32> to vector<1x1x1xf32>
    %7 = vector.extract %6[0, 0, 0] : f32 from vector<1x1x1xf32>
    %8 = arith.mulf %3, %3 : vector<32x256xf32>
    %9 = vector.shape_cast %8 : vector<32x256xf32> to vector<1x32x256xf32>
    %cst_6 = arith.constant dense<0.000000e+00> : vector<1xf32>
    %10 = vector.multi_reduction <add>, %9, %cst_6 [1, 2] : vector<1x32x256xf32> to vector<1xf32>
    %11 = vector.shape_cast %10 : vector<1xf32> to vector<1x1x1xf32>
    %12 = vector.extract %11[0, 0, 0] : f32 from vector<1x1x1xf32>
    %cst_7 = arith.constant 1.22070313E-4 : f32
    %13 = arith.mulf %7, %cst_7 : f32
    %cst_8 = arith.constant 1.22070313E-4 : f32
    %14 = arith.mulf %12, %cst_8 : f32
    %15 = arith.mulf %13, %13 : f32
    %16 = arith.subf %14, %15 : f32
    %cst_9 = arith.constant 0.000000e+00 : f32
    %17 = arith.maximumf %16, %cst_9 : f32
    %cst_10 = arith.constant 9.99999974E-6 : f32
    %18 = arith.addf %17, %cst_10 : f32
    %19 = math.rsqrt %18 : f32
    %20 = vector.broadcast %19 : f32 to vector<32x1xf32>
    %21 = arith.mulf %0, %20 : vector<32x1xf32>
    %22 = vector.broadcast %13 : f32 to vector<32x1xf32>
    %23 = arith.mulf %22, %21 : vector<32x1xf32>
    %24 = arith.subf %1, %23 : vector<32x1xf32>
    %25 = vector.broadcast %21 : vector<32x1xf32> to vector<32x256xf32>
    %26 = arith.mulf %3, %25 : vector<32x256xf32>
    %27 = vector.broadcast %24 : vector<32x1xf32> to vector<32x256xf32>
    %28 = arith.addf %26, %27 : vector<32x256xf32>
    %cst_11 = arith.constant 0.000000e+00 : f32
    %29 = vector.broadcast %cst_11 : f32 to vector<32x256xf32>
    %30 = arith.maximumf %28, %29 : vector<32x256xf32>
    %c0_12 = arith.constant 0 : index
    %c0_13 = arith.constant 0 : index
    %31 = vector.load %arg5[%c0_12, %c0_13] : memref<256x64xf32, #tpu.memory_space<vmem>>, vector<256x64xf32>
    %cst_14 = arith.constant dense<0.000000e+00> : vector<32x64xf32>
    %32 = tpu.matmul %30, %31, %cst_14 {dimension_numbers = #tpu.dot_dimension_numbers<[1], [0], [0], [1], [0, 0, 1, 1], [], []>} : vector<32x256xf32>, vector<256x64xf32>, vector<32x64xf32> -> vector<32x64xf32>
    %c0_15 = arith.constant 0 : index
    %c0_16 = arith.constant 0 : index
    %33 = vector.load %arg7[%c0_15, %c0_16] : memref<32x128xf32, #tpu.memory_space<vmem>>, vector<32x64xf32>
    tpu.vector_store %arg7[%c0_15, %c0_16], %32 {strides = array<i32>} : memref<32x128xf32, #tpu.memory_space<vmem>>, vector<32x64xf32>,
    %c1 = arith.constant 1 : index
    %c0_17 = arith.constant 0 : index
    %c0_18 = arith.constant 0 : index
    %34 = vector.load %arg1[%c1, %c0_17, %c0_18] : memref<2x32x256xf32, #tpu.memory_space<vmem>>, vector<1x32x256xf32>
    %35 = vector.shape_cast %34 : vector<1x32x256xf32> to vector<32x256xf32>
    %36 = vector.shape_cast %35 : vector<32x256xf32> to vector<1x32x256xf32>
    %cst_19 = arith.constant dense<0.000000e+00> : vector<1xf32>
    %37 = vector.multi_reduction <add>, %36, %cst_19 [1, 2] : vector<1x32x256xf32> to vector<1xf32>
    %38 = vector.shape_cast %37 : vector<1xf32> to vector<1x1x1xf32>
    %39 = vector.extract %38[0, 0, 0] : f32 from vector<1x1x1xf32>
    %40 = arith.mulf %35, %35 : vector<32x256xf32>
    %41 = vector.shape_cast %40 : vector<32x256xf32> to vector<1x32x256xf32>
    %cst_20 = arith.constant dense<0.000000e+00> : vector<1xf32>
    %42 = vector.multi_reduction <add>, %41, %cst_20 [1, 2] : vector<1x32x256xf32> to vector<1xf32>
    %43 = vector.shape_cast %42 : vector<1xf32> to vector<1x1x1xf32>
    %44 = vector.extract %43[0, 0, 0] : f32 from vector<1x1x1xf32>
    %cst_21 = arith.constant 1.22070313E-4 : f32
    %45 = arith.mulf %39, %cst_21 : f32
    %cst_22 = arith.constant 1.22070313E-4 : f32
    %46 = arith.mulf %44, %cst_22 : f32
    %47 = arith.mulf %45, %45 : f32
    %48 = arith.subf %46, %47 : f32
    %cst_23 = arith.constant 0.000000e+00 : f32
    %49 = arith.maximumf %48, %cst_23 : f32
    %cst_24 = arith.constant 9.99999974E-6 : f32
    %50 = arith.addf %49, %cst_24 : f32
    %51 = math.rsqrt %50 : f32
    %52 = vector.broadcast %51 : f32 to vector<32x1xf32>
    %53 = arith.mulf %0, %52 : vector<32x1xf32>
    %54 = vector.broadcast %45 : f32 to vector<32x1xf32>
    %55 = arith.mulf %54, %53 : vector<32x1xf32>
    %56 = arith.subf %1, %55 : vector<32x1xf32>
    %57 = vector.broadcast %53 : vector<32x1xf32> to vector<32x256xf32>
    %58 = arith.mulf %35, %57 : vector<32x256xf32>
    %59 = vector.broadcast %56 : vector<32x1xf32> to vector<32x256xf32>
    %60 = arith.addf %58, %59 : vector<32x256xf32>
    %cst_25 = arith.constant 0.000000e+00 : f32
    %61 = vector.broadcast %cst_25 : f32 to vector<32x256xf32>
    %62 = arith.maximumf %60, %61 : vector<32x256xf32>
    %c0_26 = arith.constant 0 : index
    %c0_27 = arith.constant 0 : index
    %63 = vector.load %arg5[%c0_26, %c0_27] : memref<256x64xf32, #tpu.memory_space<vmem>>, vector<256x64xf32>
    %cst_28 = arith.constant dense<0.000000e+00> : vector<32x64xf32>
    %64 = tpu.matmul %62, %63, %cst_28 {dimension_numbers = #tpu.dot_dimension_numbers<[1], [0], [0], [1], [0, 0, 1, 1], [], []>} : vector<32x256xf32>, vector<256x64xf32>, vector<32x64xf32> -> vector<32x64xf32>
    %c0_29 = arith.constant 0 : index
    %c64 = arith.constant 64 : index
    %65 = vector.load %arg7[%c0_29, %c64] : memref<32x128xf32, #tpu.memory_space<vmem>>, vector<32x64xf32>
    tpu.vector_store %arg7[%c0_29, %c64], %64 {strides = array<i32>} : memref<32x128xf32, #tpu.memory_space<vmem>>, vector<32x64xf32>,
    %c0_30 = arith.constant 0 : index
    %c0_31 = arith.constant 0 : index
    %66 = vector.load %arg4[%c0_30, %c0_31] : memref<64x32xf32, #tpu.memory_space<vmem>>, vector<64x32xf32>
    %c0_32 = arith.constant 0 : index
    %c0_33 = arith.constant 0 : index
    %67 = vector.load %arg7[%c0_32, %c0_33] : memref<32x128xf32, #tpu.memory_space<vmem>>, vector<32x128xf32>
    %cst_34 = arith.constant dense<0.000000e+00> : vector<64x128xf32>
    %68 = tpu.matmul %66, %67, %cst_34 {dimension_numbers = #tpu.dot_dimension_numbers<[1], [0], [0], [1], [0, 0, 1, 1], [], []>} : vector<64x32xf32>, vector<32x128xf32>, vector<64x128xf32> -> vector<64x128xf32>
    %c0_35 = arith.constant 0 : index
    %c0_36 = arith.constant 0 : index
    %c0_37 = arith.constant 0 : index
    %69 = vector.load %arg6[%c0_35, %c0_36, %c0_37] : memref<1x64x128xf32, #tpu.memory_space<vmem>>, vector<1x64x128xf32>
    %70 = vector.shape_cast %69 : vector<1x64x128xf32> to vector<64x128xf32>
    %71 = vector.shape_cast %68 : vector<64x128xf32> to vector<1x64x128xf32>
    tpu.vector_store %arg6[%c0_35, %c0_36, %c0_37], %71 {strides = array<i32>} : memref<1x64x128xf32, #tpu.memory_space<vmem>>, vector<1x64x128xf32>,
    return
  }
  func.func @transform_0(%arg0: i32) -> (i32, i32, i32) {
    %c0_i32 = arith.constant 0 : i32
    %c0_i32_0 = arith.constant 0 : i32
    %c0_i32_1 = arith.constant 0 : i32
    return %arg0, %c0_i32, %c0_i32_0 : i32, i32, i32
  }
  func.func @transform_1(%arg0: i32) -> (i32, i32) {
    %c0_i32 = arith.constant 0 : i32
    %c0_i32_0 = arith.constant 0 : i32
    %c0_i32_1 = arith.constant 0 : i32
    return %c0_i32, %c0_i32_0 : i32, i32
  }
  func.func @transform_2(%arg0: i32) -> (i32, i32) {
    %c0_i32 = arith.constant 0 : i32
    %c0_i32_0 = arith.constant 0 : i32
    %c0_i32_1 = arith.constant 0 : i32
    return %c0_i32, %c0_i32_0 : i32, i32
  }
  func.func @transform_3(%arg0: i32) -> (i32, i32) {
    %c0_i32 = arith.constant 0 : i32
    %c0_i32_0 = arith.constant 0 : i32
    %c0_i32_1 = arith.constant 0 : i32
    return %c0_i32, %c0_i32_0 : i32, i32
  }
  func.func @transform_4(%arg0: i32) -> (i32, i32) {
    %c0_i32 = arith.constant 0 : i32
    %c0_i32_0 = arith.constant 0 : i32
    %c0_i32_1 = arith.constant 0 : i32
    return %c0_i32, %c0_i32_0 : i32, i32
  }
  func.func @transform_5(%arg0: i32) -> (i32, i32, i32) {
    %c0_i32 = arith.constant 0 : i32
    %c0_i32_0 = arith.constant 0 : i32
    %c0_i32_1 = arith.constant 0 : i32
    return %arg0, %c0_i32, %c0_i32_0 : i32, i32, i32
  }
}

</mosaic_0001>

<llo_original>
// kernel: tpu_custom_call.1
$region0: #{tpu_custom_call.1}
  #allocation0 [shape = 'u32[]', space=smem, size = 0x4, offset = 0x4, fixed_abs, tag = 'smem constant byte address 0x4 - core index']
  #allocation1 [shape = 'u32[144,128]{1,0:T(1,128)}', space=vmem, size = 0x12000, scoped, tag = 'internal scratch']
  #allocation2 [shape = 'f32[32,128]{1,0:T(8,128)}', space=vmem, size = 0x4000, scoped, tag = 'scratch operand']
  %s0 = inlined_call_operand.vmem [shape: f32[2,32,256], index: 0, kind: input, shape index: {}]
  %s1 = inlined_call_operand.vmem [shape: f32[32,1], index: 1, kind: input, shape index: {}]
  %s2 = inlined_call_operand.vmem [shape: f32[32,1], index: 2, kind: input, shape index: {}]
  %s3 = inlined_call_operand.vmem [shape: f32[64,32], index: 3, kind: input, shape index: {}]
  %s4 = inlined_call_operand.vmem [shape: f32[256,64], index: 4, kind: input, shape index: {}]
  %s5 = inlined_call_operand.hbm [shape: f32[1,64,128], index: 5, kind: output, shape index: {}]
  %s6 = sld [smem:[#allocation0]]
  $region30: #{tpu_custom_call.1} parent=0
    _
  %s8 = ssub.s32 1, %s6
  %s9 = scalar_select 0, %s8, %s6
  $region1: #{tpu_custom_call.1} parent=0
    #allocation3 [shape = 'u8[32768]{0}', space=vmem, size = 0x8000, scoped, tag = 'output window, operand 0, single buffered']
    #allocation4 [shape = 's32[1]{0}', space=sflag, size = 0x4, scoped, tag = 'scoped memory for tpu_custom_call.1']
    %10 = vsyncpa [#allocation4], 0
    // Predicated region
    $region2: #{tpu_custom_call.1} parent=1 // pred_check
      _
    $region3: #{tpu_custom_call.1} parent=1 // pred_check_branch
      %12 = sbr.rel (0) target = $region5
    $region4: #{tpu_custom_call.1} parent=1 // pred_region
      _
    $region5: #{tpu_custom_call.1} parent=1 // pred_fallthru
      _
    // Predicated region
    $region6: #{tpu_custom_call.1} parent=1 // pred_check
      _
    $region7: #{tpu_custom_call.1} parent=1 // pred_check_branch
      %14 = sbr.rel (0) target = $region9
    $region8: #{tpu_custom_call.1} parent=1 // pred_region
      _
    $region9: #{tpu_custom_call.1} parent=1 // pred_fallthru
      _
    // Predicated region
    $region10: #{tpu_custom_call.1} parent=1 // pred_check
      _
    $region11: #{tpu_custom_call.1} parent=1 // pred_check_branch
      %16 = sbr.rel (0) target = $region13
    $region12: #{tpu_custom_call.1} parent=1 // pred_region
      _
    $region13: #{tpu_custom_call.1} parent=1 // pred_fallthru
      _
    // Predicated region
    $region14: #{tpu_custom_call.1} parent=1 // pred_check
      _
    $region15: #{tpu_custom_call.1} parent=1 // pred_check_branch
      %18 = sbr.rel (0) target = $region17
    $region16: #{tpu_custom_call.1} parent=1 // pred_region
      _
    $region17: #{tpu_custom_call.1} parent=1 // pred_fallthru
      _
    // Predicated region
    $region18: #{tpu_custom_call.1} parent=1 // pred_check
      _
    $region19: #{tpu_custom_call.1} parent=1 // pred_check_branch
      %20 = sbr.rel (0) target = $region21
    $region20: #{tpu_custom_call.1} parent=1 // pred_region
      _
    $region21: #{tpu_custom_call.1} parent=1 // pred_fallthru
      _
    %v21 = vld [vmem:[%s1] sm:$0xff]
    %v22 = vld [vmem:[%s1 + $0x8] sm:$0xff]
    %v23 = vld [vmem:[%s1 + $0x10] sm:$0xff]
    %v24 = vld [vmem:[%s1 + $0x18] sm:$0xff]
    %v25 = vld [vmem:[%s2] sm:$0xff]
    %v26 = vld [vmem:[%s2 + $0x8] sm:$0xff]
    %v27 = vld [vmem:[%s2 + $0x10] sm:$0xff]
    %v28 = vld [vmem:[%s2 + $0x18] sm:$0xff]
    %v29 = vld [vmem:[%s0] sm:$0xff]
    %v30 = vld [vmem:[%s0 + $0x8] sm:$0xff]
    %v31 = vld [vmem:[%s0 + $0x10] sm:$0xff]
    %v32 = vld [vmem:[%s0 + $0x18] sm:$0xff]
    %v33 = vld [vmem:[%s0 + $0x20] sm:$0xff]
    %v34 = vld [vmem:[%s0 + $0x28] sm:$0xff]
    %v35 = vld [vmem:[%s0 + $0x30] sm:$0xff]
    %v36 = vld [vmem:[%s0 + $0x38] sm:$0xff]
    %v37 = vadd.f32 %v29, %v30
    %v38 = vadd.f32 %v37, %v31
    %v39 = vadd.f32 %v38, %v32
    %v40 = vadd.f32 %v39, %v33
    %v41 = vadd.f32 %v40, %v34
    %v42 = vadd.f32 %v41, %v35
    %v43 = vadd.f32 %v42, %v36
    %44 = vadd.xlane.f32.xlu0 %v43
    %v45 = vpop.xlane.xlu0 %44
    %v46 = vrot.slane %v45, 4
    %v47 = vadd.f32 %v45, %v46
    %v48 = vrot.slane %v47, 2
    %v49 = vadd.f32 %v47, %v48
    %v50 = vrot.slane %v49, 1
    %v51 = vadd.f32 %v49, %v50
    %s52 = vtos %v51
    %v53 = vmul.f32 %v29, %v29
    %v54 = vmul.f32 %v30, %v30
    %v55 = vmul.f32 %v31, %v31
    %v56 = vmul.f32 %v32, %v32
    %v57 = vmul.f32 %v33, %v33
    %v58 = vmul.f32 %v34, %v34
    %v59 = vmul.f32 %v35, %v35
    %v60 = vmul.f32 %v36, %v36
    %v61 = vadd.f32 %v53, %v54
    %v62 = vadd.f32 %v61, %v55
    %v63 = vadd.f32 %v62, %v56
    %v64 = vadd.f32 %v63, %v57
    %v65 = vadd.f32 %v64, %v58
    %v66 = vadd.f32 %v65, %v59
    %v67 = vadd.f32 %v66, %v60
    %68 = vadd.xlane.f32.xlu0 %v67
    %v69 = vpop.xlane.xlu0 %68
    %v70 = vrot.slane %v69, 4
    %v71 = vadd.f32 %v69, %v70
    %v72 = vrot.slane %v71, 2
    %v73 = vadd.f32 %v71, %v72
    %v74 = vrot.slane %v73, 1
    %v75 = vadd.f32 %v73, %v74
    %s76 = vtos %v75
    %s77 = smul.f32 %s52, 0.00012207031
    %s78 = smul.f32 %s76, 0.00012207031
    %s79 = smul.f32 %s77, %s77
    %s80 = ssub.f32 %s78, %s79
    %s81 = smax.f32 %s80, 0.0
    %s82 = sadd.f32 %s81, 1e-05
    %v83 = vstv %s82
    %v84 = vrsqrt.pop %v83
    %s85 = vtos %v84
    %v86 = vstv %s85
    %v87 = vmul.f32 %v21, %v86
    %v88 = vmul.f32 %v22, %v86
    %v89 = vmul.f32 %v23, %v86
    %v90 = vmul.f32 %v24, %v86
    %v91 = vstv %s77
    %v92 = vmul.f32 %v91, %v87
    %v93 = vmul.f32 %v91, %v88
    %v94 = vmul.f32 %v91, %v89
    %v95 = vmul.f32 %v91, %v90
    %v96 = vsub.f32 %v25, %v92
    %v97 = vsub.f32 %v26, %v93
    %v98 = vsub.f32 %v27, %v94
    %v99 = vsub.f32 %v28, %v95
    %101 = vset.pattern.permute.xlu0 0
    %102 = vperm.xlu0 %101, %v87
    %v103 = vpop.permute.xlu0 %102
    %106 = vset.pattern.permute.xlu0 0
    %107 = vperm.xlu0 %106, %v88
    %v108 = vpop.permute.xlu0 %107
    %111 = vset.pattern.permute.xlu0 0
    %112 = vperm.xlu0 %111, %v89
    %v113 = vpop.permute.xlu0 %112
    %116 = vset.pattern.permute.xlu0 0
    %117 = vperm.xlu0 %116, %v90
    %v118 = vpop.permute.xlu0 %117
    %v120 = vmul.f32 %v29, %v103
    %v121 = vmul.f32 %v30, %v103
    %v122 = vmul.f32 %v31, %v108
    %v123 = vmul.f32 %v32, %v108
    %v124 = vmul.f32 %v33, %v113
    %v125 = vmul.f32 %v34, %v113
    %v126 = vmul.f32 %v35, %v118
    %v127 = vmul.f32 %v36, %v118
    %129 = vset.pattern.permute.xlu0 0
    %130 = vperm.xlu0 %129, %v96
    %v131 = vpop.permute.xlu0 %130
    %134 = vset.pattern.permute.xlu0 0
    %135 = vperm.xlu0 %134, %v97
    %v136 = vpop.permute.xlu0 %135
    %139 = vset.pattern.permute.xlu0 0
    %140 = vperm.xlu0 %139, %v98
    %v141 = vpop.permute.xlu0 %140
    %144 = vset.pattern.permute.xlu0 0
    %145 = vperm.xlu0 %144, %v99
    %v146 = vpop.permute.xlu0 %145
    %v148 = vadd.f32 %v120, %v131
    %v149 = vadd.f32 %v121, %v131
    %v150 = vadd.f32 %v122, %v136
    %v151 = vadd.f32 %v123, %v136
    %v152 = vadd.f32 %v124, %v141
    %v153 = vadd.f32 %v125, %v141
    %v154 = vadd.f32 %v126, %v146
    %v155 = vadd.f32 %v127, %v146
    %v156 = vmax.f32 %v148, 0.0
    %v157 = vmax.f32 %v149, 0.0
    %v158 = vmax.f32 %v150, 0.0
    %v159 = vmax.f32 %v151, 0.0
    %v160 = vmax.f32 %v152, 0.0
    %v161 = vmax.f32 %v153, 0.0
    %v162 = vmax.f32 %v154, 0.0
    %v163 = vmax.f32 %v155, 0.0
    %v164 = vld [vmem:[%s4] sm:$0xff]
    %v165 = vld [vmem:[%s4 + $0x8] sm:$0xff]
    %v166 = vld [vmem:[%s4 + $0x10] sm:$0xff]
    %v167 = vld [vmem:[%s4 + $0x18] sm:$0xff]
    %v168 = vld [vmem:[%s4 + $0x20] sm:$0xff]
    %v169 = vld [vmem:[%s4 + $0x28] sm:$0xff]
    %v170 = vld [vmem:[%s4 + $0x30] sm:$0xff]
    %v171 = vld [vmem:[%s4 + $0x38] sm:$0xff]
    %v172 = vld [vmem:[%s4 + $0x40] sm:$0xff]
    %v173 = vld [vmem:[%s4 + $0x48] sm:$0xff]
    %v174 = vld [vmem:[%s4 + $0x50] sm:$0xff]
    %v175 = vld [vmem:[%s4 + $0x58] sm:$0xff]
    %v176 = vld [vmem:[%s4 + $0x60] sm:$0xff]
    %v177 = vld [vmem:[%s4 + $0x68] sm:$0xff]
    %v178 = vld [vmem:[%s4 + $0x70] sm:$0xff]
    %v179 = vld [vmem:[%s4 + $0x78] sm:$0xff]
    %v180 = vld [vmem:[%s4 + $0x80] sm:$0xff]
    %v181 = vld [vmem:[%s4 + $0x88] sm:$0xff]
    %v182 = vld [vmem:[%s4 + $0x90] sm:$0xff]
    %v183 = vld [vmem:[%s4 + $0x98] sm:$0xff]
    %v184 = vld [vmem:[%s4 + $0xa0] sm:$0xff]
    %v185 = vld [vmem:[%s4 + $0xa8] sm:$0xff]
    %v186 = vld [vmem:[%s4 + $0xb0] sm:$0xff]
    %v187 = vld [vmem:[%s4 + $0xb8] sm:$0xff]
    %v188 = vld [vmem:[%s4 + $0xc0] sm:$0xff]
    %v189 = vld [vmem:[%s4 + $0xc8] sm:$0xff]
    %v190 = vld [vmem:[%s4 + $0xd0] sm:$0xff]
    %v191 = vld [vmem:[%s4 + $0xd8] sm:$0xff]
    %v192 = vld [vmem:[%s4 + $0xe0] sm:$0xff]
    %v193 = vld [vmem:[%s4 + $0xe8] sm:$0xff]
    %v194 = vld [vmem:[%s4 + $0xf0] sm:$0xff]
    %v195 = vld [vmem:[%s4 + $0xf8] sm:$0xff]
    %196 = vmatprep.subr.mxu0 0.0
    %197 = vmatpush1.msra.mxu0 %v164
    %198 = vmatprep.subr.mxu0 0.0
    %199 = vmatpush1.msra.mxu0 %v165
    %200 = vmatprep.subr.mxu0 0.0
    %201 = vmatpush1.msra.mxu0 %v166
    %202 = vmatprep.subr.mxu0 0.0
    %203 = vmatpush1.msra.mxu0 %v167
    %204 = vmatprep.subr.mxu0 0.0
    %205 = vmatpush1.msra.mxu0 %v168
    %206 = vmatprep.subr.mxu0 0.0
    %207 = vmatpush1.msra.mxu0 %v169
    %208 = vmatprep.subr.mxu0 0.0
    %209 = vmatpush1.msra.mxu0 %v170
    %210 = vmatprep.subr.mxu0 0.0
    %211 = vmatpush1.msra.mxu0 %v171
    %212 = vmatprep.subr.mxu0 0.0
    %213 = vmatpush1.msra.mxu0 %v172
    %214 = vmatprep.subr.mxu0 0.0
    %215 = vmatpush1.msra.mxu0 %v173
    %216 = vmatprep.subr.mxu0 0.0
    %217 = vmatpush1.msra.mxu0 %v174
    %218 = vmatprep.subr.mxu0 0.0
    %219 = vmatpush1.msra.mxu0 %v175
    %220 = vmatprep.subr.mxu0 0.0
    %221 = vmatpush1.msra.mxu0 %v176
    %222 = vmatprep.subr.mxu0 0.0
    %223 = vmatpush1.msra.mxu0 %v177
    %224 = vmatprep.subr.mxu0 0.0
    %225 = vmatpush1.msra.mxu0 %v178
    %226 = vmatprep.subr.mxu0 0.0
    %227 = vmatpush1.msra.mxu0 %v179
    %228 = vmatprep.subr.mxu0 0.0
    %229 = vmatpush1.msra.mxu0 %v180
    %230 = vmatprep.subr.mxu0 0.0
    %231 = vmatpush1.msra.mxu0 %v181
    %232 = vmatprep.subr.mxu0 0.0
    %233 = vmatpush1.msra.mxu0 %v182
    %234 = vmatprep.subr.mxu0 0.0
    %235 = vmatpush1.msra.mxu0 %v183
    %236 = vmatprep.subr.mxu0 0.0
    %237 = vmatpush1.msra.mxu0 %v184
    %238 = vmatprep.subr.mxu0 0.0
    %239 = vmatpush1.msra.mxu0 %v185
    %240 = vmatprep.subr.mxu0 0.0
    %241 = vmatpush1.msra.mxu0 %v186
    %242 = vmatprep.subr.mxu0 0.0
    %243 = vmatpush1.msra.mxu0 %v187
    %244 = vmatprep.subr.mxu0 0.0
    %245 = vmatpush1.msra.mxu0 %v188
    %246 = vmatprep.subr.mxu0 0.0
    %247 = vmatpush1.msra.mxu0 %v189
    %248 = vmatprep.subr.mxu0 0.0
    %249 = vmatpush1.msra.mxu0 %v190
    %250 = vmatprep.subr.mxu0 0.0
    %251 = vmatpush1.msra.mxu0 %v191
    %252 = vmatprep.subr.mxu0 0.0
    %253 = vmatpush1.msra.mxu0 %v192
    %254 = vmatprep.subr.mxu0 0.0
    %255 = vmatpush1.msra.mxu0 %v193
    %256 = vmatprep.subr.mxu0 0.0
    %257 = vmatpush1.msra.mxu0 %v194
    %258 = vmatprep.subr.mxu0 0.0
    %259 = vmatpush1.msra.mxu0 %v195
    %260 = vmatprep.mubr.f32.mxu0 %v157
    %261 = vmatmul.mubr.f32.gmra.mrb[0].mxu0 %v156
    %v262 = vpop.f32.mrb[0].mxu0
    %v263 = vadd.f32 0.0, %v262
    %v264 = vpop.f32.mrb[0].mxu0
    %265 = vmatprep.mubr.f32.mxu0 %v159
    %266 = vmatmul.mubr.f32.gmra.mrb[0].mxu0 %v158
    %v267 = vpop.f32.mrb[0].mxu0
    %v268 = vadd.f32 0.0, %v267
    %v269 = vpop.f32.mrb[0].mxu0
    %270 = vmatprep.mubr.f32.mxu0 %v161
    %271 = vmatmul.mubr.f32.gmra.mrb[0].mxu0 %v160
    %v272 = vpop.f32.mrb[0].mxu0
    %v273 = vadd.f32 0.0, %v272
    %v274 = vpop.f32.mrb[0].mxu0
    %275 = vmatprep.mubr.f32.mxu0 %v163
    %276 = vmatmul.mubr.f32.gmra.mrb[0].mxu0 %v162
    %v277 = vpop.f32.mrb[0].mxu0
    %v278 = vadd.f32 0.0, %v277
    %v279 = vpop.f32.mrb[0].mxu0
    %280 = vdwg.mxu0
    %vm281 = vcmask 523264
    %282 = vst.msk [vmem:[#allocation2] sm:$0xff] %vm281, %v263
    %283 = vst.msk [vmem:[#allocation2 + $0x8] sm:$0xff] %vm281, %v268
    %284 = vst.msk [vmem:[#allocation2 + $0x10] sm:$0xff] %vm281, %v273
    %285 = vst.msk [vmem:[#allocation2 + $0x18] sm:$0xff] %vm281, %v278
    %s286 = scalar_lea.vmem %s0, 64
    %v287 = vld [vmem:[%s286] sm:$0xff]
    %v288 = vld [vmem:[%s286 + $0x8] sm:$0xff]
    %v289 = vld [vmem:[%s286 + $0x10] sm:$0xff]
    %v290 = vld [vmem:[%s286 + $0x18] sm:$0xff]
    %v291 = vld [vmem:[%s286 + $0x20] sm:$0xff]
    %v292 = vld [vmem:[%s286 + $0x28] sm:$0xff]
    %v293 = vld [vmem:[%s286 + $0x30] sm:$0xff]
    %v294 = vld [vmem:[%s286 + $0x38] sm:$0xff]
    %v295 = vadd.f32 %v287, %v288
    %v296 = vadd.f32 %v295, %v289
    %v297 = vadd.f32 %v296, %v290
    %v298 = vadd.f32 %v297, %v291
    %v299 = vadd.f32 %v298, %v292
    %v300 = vadd.f32 %v299, %v293
    %v301 = vadd.f32 %v300, %v294
    %302 = vadd.xlane.f32.xlu0 %v301
    %v303 = vpop.xlane.xlu0 %302
    %v304 = vrot.slane %v303, 4
    %v305 = vadd.f32 %v303, %v304
    %v306 = vrot.slane %v305, 2
    %v307 = vadd.f32 %v305, %v306
    %v308 = vrot.slane %v307, 1
    %v309 = vadd.f32 %v307, %v308
    %s310 = vtos %v309
    %v311 = vmul.f32 %v287, %v287
    %v312 = vmul.f32 %v288, %v288
    %v313 = vmul.f32 %v289, %v289
    %v314 = vmul.f32 %v290, %v290
    %v315 = vmul.f32 %v291, %v291
    %v316 = vmul.f32 %v292, %v292
    %v317 = vmul.f32 %v293, %v293
    %v318 = vmul.f32 %v294, %v294
    %v319 = vadd.f32 %v311, %v312
    %v320 = vadd.f32 %v319, %v313
    %v321 = vadd.f32 %v320, %v314
    %v322 = vadd.f32 %v321, %v315
    %v323 = vadd.f32 %v322, %v316
    %v324 = vadd.f32 %v323, %v317
    %v325 = vadd.f32 %v324, %v318
    %326 = vadd.xlane.f32.xlu0 %v325
    %v327 = vpop.xlane.xlu0 %326
    %v328 = vrot.slane %v327, 4
    %v329 = vadd.f32 %v327, %v328
    %v330 = vrot.slane %v329, 2
    %v331 = vadd.f32 %v329, %v330
    %v332 = vrot.slane %v331, 1
    %v333 = vadd.f32 %v331, %v332
    %s334 = vtos %v333
    %s335 = smul.f32 %s310, 0.00012207031
    %s336 = smul.f32 %s334, 0.00012207031
    %s337 = smul.f32 %s335, %s335
    %s338 = ssub.f32 %s336, %s337
    %s339 = smax.f32 %s338, 0.0
    %s340 = sadd.f32 %s339, 1e-05
    %v341 = vstv %s340
    %v342 = vrsqrt.pop %v341
    %s343 = vtos %v342
    %v344 = vstv %s343
    %v345 = vmul.f32 %v21, %v344
    %v346 = vmul.f32 %v22, %v344
    %v347 = vmul.f32 %v23, %v344
    %v348 = vmul.f32 %v24, %v344
    %v349 = vstv %s335
    %v350 = vmul.f32 %v349, %v345
    %v351 = vmul.f32 %v349, %v346
    %v352 = vmul.f32 %v349, %v347
    %v353 = vmul.f32 %v349, %v348
    %v354 = vsub.f32 %v25, %v350
    %v355 = vsub.f32 %v26, %v351
    %v356 = vsub.f32 %v27, %v352
    %v357 = vsub.f32 %v28, %v353
    %359 = vset.pattern.permute.xlu0 0
    %360 = vperm.xlu0 %359, %v345
    %v361 = vpop.permute.xlu0 %360
    %364 = vset.pattern.permute.xlu0 0
    %365 = vperm.xlu0 %364, %v346
    %v366 = vpop.permute.xlu0 %365
    %369 = vset.pattern.permute.xlu0 0
    %370 = vperm.xlu0 %369, %v347
    %v371 = vpop.permute.xlu0 %370
    %374 = vset.pattern.permute.xlu0 0
    %375 = vperm.xlu0 %374, %v348
    %v376 = vpop.permute.xlu0 %375
    %v378 = vmul.f32 %v287, %v361
    %v379 = vmul.f32 %v288, %v361
    %v380 = vmul.f32 %v289, %v366
    %v381 = vmul.f32 %v290, %v366
    %v382 = vmul.f32 %v291, %v371
    %v383 = vmul.f32 %v292, %v371
    %v384 = vmul.f32 %v293, %v376
    %v385 = vmul.f32 %v294, %v376
    %387 = vset.pattern.permute.xlu0 0
    %388 = vperm.xlu0 %387, %v354
    %v389 = vpop.permute.xlu0 %388
    %392 = vset.pattern.permute.xlu0 0
    %393 = vperm.xlu0 %392, %v355
    %v394 = vpop.permute.xlu0 %393
    %397 = vset.pattern.permute.xlu0 0
    %398 = vperm.xlu0 %397, %v356
    %v399 = vpop.permute.xlu0 %398
    %402 = vset.pattern.permute.xlu0 0
    %403 = vperm.xlu0 %402, %v357
    %v404 = vpop.permute.xlu0 %403
    %v406 = vadd.f32 %v378, %v389
    %v407 = vadd.f32 %v379, %v389
    %v408 = vadd.f32 %v380, %v394
    %v409 = vadd.f32 %v381, %v394
    %v410 = vadd.f32 %v382, %v399
    %v411 = vadd.f32 %v383, %v399
    %v412 = vadd.f32 %v384, %v404
    %v413 = vadd.f32 %v385, %v404
    %v414 = vmax.f32 %v406, 0.0
    %v415 = vmax.f32 %v407, 0.0
    %v416 = vmax.f32 %v408, 0.0
    %v417 = vmax.f32 %v409, 0.0
    %v418 = vmax.f32 %v410, 0.0
    %v419 = vmax.f32 %v411, 0.0
    %v420 = vmax.f32 %v412, 0.0
    %v421 = vmax.f32 %v413, 0.0
    %v422 = vld [vmem:[%s4] sm:$0xff]
    %v423 = vld [vmem:[%s4 + $0x8] sm:$0xff]
    %v424 = vld [vmem:[%s4 + $0x10] sm:$0xff]
    %v425 = vld [vmem:[%s4 + $0x18] sm:$0xff]
    %v426 = vld [vmem:[%s4 + $0x20] sm:$0xff]
    %v427 = vld [vmem:[%s4 + $0x28] sm:$0xff]
    %v428 = vld [vmem:[%s4 + $0x30] sm:$0xff]
    %v429 = vld [vmem:[%s4 + $0x38] sm:$0xff]
    %v430 = vld [vmem:[%s4 + $0x40] sm:$0xff]
    %v431 = vld [vmem:[%s4 + $0x48] sm:$0xff]
    %v432 = vld [vmem:[%s4 + $0x50] sm:$0xff]
    %v433 = vld [vmem:[%s4 + $0x58] sm:$0xff]
    %v434 = vld [vmem:[%s4 + $0x60] sm:$0xff]
    %v435 = vld [vmem:[%s4 + $0x68] sm:$0xff]
    %v436 = vld [vmem:[%s4 + $0x70] sm:$0xff]
    %v437 = vld [vmem:[%s4 + $0x78] sm:$0xff]
    %v438 = vld [vmem:[%s4 + $0x80] sm:$0xff]
    %v439 = vld [vmem:[%s4 + $0x88] sm:$0xff]
    %v440 = vld [vmem:[%s4 + $0x90] sm:$0xff]
    %v441 = vld [vmem:[%s4 + $0x98] sm:$0xff]
    %v442 = vld [vmem:[%s4 + $0xa0] sm:$0xff]
    %v443 = vld [vmem:[%s4 + $0xa8] sm:$0xff]
    %v444 = vld [vmem:[%s4 + $0xb0] sm:$0xff]
    %v445 = vld [vmem:[%s4 + $0xb8] sm:$0xff]
    %v446 = vld [vmem:[%s4 + $0xc0] sm:$0xff]
    %v447 = vld [vmem:[%s4 + $0xc8] sm:$0xff]
    %v448 = vld [vmem:[%s4 + $0xd0] sm:$0xff]
    %v449 = vld [vmem:[%s4 + $0xd8] sm:$0xff]
    %v450 = vld [vmem:[%s4 + $0xe0] sm:$0xff]
    %v451 = vld [vmem:[%s4 + $0xe8] sm:$0xff]
    %v452 = vld [vmem:[%s4 + $0xf0] sm:$0xff]
    %v453 = vld [vmem:[%s4 + $0xf8] sm:$0xff]
    %454 = vmatprep.subr.mxu0 0.0
    %455 = vmatpush1.msra.mxu0 %v422
    %456 = vmatprep.subr.mxu0 0.0
    %457 = vmatpush1.msra.mxu0 %v423
    %458 = vmatprep.subr.mxu0 0.0
    %459 = vmatpush1.msra.mxu0 %v424
    %460 = vmatprep.subr.mxu0 0.0
    %461 = vmatpush1.msra.mxu0 %v425
    %462 = vmatprep.subr.mxu0 0.0
    %463 = vmatpush1.msra.mxu0 %v426
    %464 = vmatprep.subr.mxu0 0.0
    %465 = vmatpush1.msra.mxu0 %v427
    %466 = vmatprep.subr.mxu0 0.0
    %467 = vmatpush1.msra.mxu0 %v428
    %468 = vmatprep.subr.mxu0 0.0
    %469 = vmatpush1.msra.mxu0 %v429
    %470 = vmatprep.subr.mxu0 0.0
    %471 = vmatpush1.msra.mxu0 %v430
    %472 = vmatprep.subr.mxu0 0.0
    %473 = vmatpush1.msra.mxu0 %v431
    %474 = vmatprep.subr.mxu0 0.0
    %475 = vmatpush1.msra.mxu0 %v432
    %476 = vmatprep.subr.mxu0 0.0
    %477 = vmatpush1.msra.mxu0 %v433
    %478 = vmatprep.subr.mxu0 0.0
    %479 = vmatpush1.msra.mxu0 %v434
    %480 = vmatprep.subr.mxu0 0.0
    %481 = vmatpush1.msra.mxu0 %v435
    %482 = vmatprep.subr.mxu0 0.0
    %483 = vmatpush1.msra.mxu0 %v436
    %484 = vmatprep.subr.mxu0 0.0
    %485 = vmatpush1.msra.mxu0 %v437
    %486 = vmatprep.subr.mxu0 0.0
    %487 = vmatpush1.msra.mxu0 %v438
    %488 = vmatprep.subr.mxu0 0.0
    %489 = vmatpush1.msra.mxu0 %v439
    %490 = vmatprep.subr.mxu0 0.0
    %491 = vmatpush1.msra.mxu0 %v440
    %492 = vmatprep.subr.mxu0 0.0
    %493 = vmatpush1.msra.mxu0 %v441
    %494 = vmatprep.subr.mxu0 0.0
    %495 = vmatpush1.msra.mxu0 %v442
    %496 = vmatprep.subr.mxu0 0.0
    %497 = vmatpush1.msra.mxu0 %v443
    %498 = vmatprep.subr.mxu0 0.0
    %499 = vmatpush1.msra.mxu0 %v444
    %500 = vmatprep.subr.mxu0 0.0
    %501 = vmatpush1.msra.mxu0 %v445
    %502 = vmatprep.subr.mxu0 0.0
    %503 = vmatpush1.msra.mxu0 %v446
    %504 = vmatprep.subr.mxu0 0.0
    %505 = vmatpush1.msra.mxu0 %v447
    %506 = vmatprep.subr.mxu0 0.0
    %507 = vmatpush1.msra.mxu0 %v448
    %508 = vmatprep.subr.mxu0 0.0
    %509 = vmatpush1.msra.mxu0 %v449
    %510 = vmatprep.subr.mxu0 0.0
    %511 = vmatpush1.msra.mxu0 %v450
    %512 = vmatprep.subr.mxu0 0.0
    %513 = vmatpush1.msra.mxu0 %v451
    %514 = vmatprep.subr.mxu0 0.0
    %515 = vmatpush1.msra.mxu0 %v452
    %516 = vmatprep.subr.mxu0 0.0
    %517 = vmatpush1.msra.mxu0 %v453
    %518 = vmatprep.mubr.f32.mxu0 %v415
    %519 = vmatmul.mubr.f32.gmra.mrb[0].mxu0 %v414
    %v520 = vpop.f32.mrb[0].mxu0
    %v521 = vadd.f32 0.0, %v520
    %v522 = vpop.f32.mrb[0].mxu0
    %523 = vmatprep.mubr.f32.mxu0 %v417
    %524 = vmatmul.mubr.f32.gmra.mrb[0].mxu0 %v416
    %v525 = vpop.f32.mrb[0].mxu0
    %v526 = vadd.f32 0.0, %v525
    %v527 = vpop.f32.mrb[0].mxu0
    %528 = vmatprep.mubr.f32.mxu0 %v419
    %529 = vmatmul.mubr.f32.gmra.mrb[0].mxu0 %v418
    %v530 = vpop.f32.mrb[0].mxu0
    %v531 = vadd.f32 0.0, %v530
    %v532 = vpop.f32.mrb[0].mxu0
    %533 = vmatprep.mubr.f32.mxu0 %v421
    %534 = vmatmul.mubr.f32.gmra.mrb[0].mxu0 %v420
    %v535 = vpop.f32.mrb[0].mxu0
    %v536 = vadd.f32 0.0, %v535
    %v537 = vpop.f32.mrb[0].mxu0
    %538 = vdwg.mxu0
    %543 = vrot.lane.b32.xlu0 %v521, 64
    %v544 = vpop.permute.xlu0 %543
    %545 = vrot.lane.b32.xlu0 %v526, 64
    %v546 = vpop.permute.xlu0 %545
    %547 = vrot.lane.b32.xlu0 %v531, 64
    %v548 = vpop.permute.xlu0 %547
    %549 = vrot.lane.b32.xlu0 %v536, 64
    %v550 = vpop.permute.xlu0 %549
    %vm555 = vcmask 1048064
    %556 = vst.msk [vmem:[#allocation2] sm:$0xff] %vm555, %v544
    %557 = vst.msk [vmem:[#allocation2 + $0x8] sm:$0xff] %vm555, %v546
    %558 = vst.msk [vmem:[#allocation2 + $0x10] sm:$0xff] %vm555, %v548
    %559 = vst.msk [vmem:[#allocation2 + $0x18] sm:$0xff] %vm555, %v550
    %v560 = vld [vmem:[%s3] sm:$0xff]
    %v561 = vld [vmem:[%s3 + $0x8] sm:$0xff]
    %v562 = vld [vmem:[%s3 + $0x10] sm:$0xff]
    %v563 = vld [vmem:[%s3 + $0x18] sm:$0xff]
    %v564 = vld [vmem:[%s3 + $0x20] sm:$0xff]
    %v565 = vld [vmem:[%s3 + $0x28] sm:$0xff]
    %v566 = vld [vmem:[%s3 + $0x30] sm:$0xff]
    %v567 = vld [vmem:[%s3 + $0x38] sm:$0xff]
    %v568 = vld [vmem:[#allocation2] sm:$0xff]
    %v569 = vld [vmem:[#allocation2 + $0x8] sm:$0xff]
    %v570 = vld [vmem:[#allocation2 + $0x10] sm:$0xff]
    %v571 = vld [vmem:[#allocation2 + $0x18] sm:$0xff]
    %vm572 = vcmask 261120
    %v574 = vsel %vm572, %v560, 0
    %v577 = vsel %vm572, %v561, 0
    %v580 = vsel %vm572, %v562, 0
    %v583 = vsel %vm572, %v563, 0
    %v586 = vsel %vm572, %v564, 0
    %v589 = vsel %vm572, %v565, 0
    %v592 = vsel %vm572, %v566, 0
    %v595 = vsel %vm572, %v567, 0
    %597 = vmatprep.subr.mxu0 0.0
    %598 = vmatpush1.msra.mxu0 %v568
    %599 = vmatprep.subr.mxu0 0.0
    %600 = vmatpush1.msra.mxu0 %v569
    %601 = vmatprep.subr.mxu0 0.0
    %602 = vmatpush1.msra.mxu0 %v570
    %603 = vmatprep.subr.mxu0 0.0
    %604 = vmatpush1.msra.mxu0 %v571
    %605 = vmatprep.subr.mxu0 0.0
    %606 = vmatpush1.msra.mxu0 0.0
    %607 = vmatprep.subr.mxu0 0.0
    %608 = vmatpush1.msra.mxu0 0.0
    %609 = vmatprep.subr.mxu0 0.0
    %610 = vmatpush1.msra.mxu0 0.0
    %611 = vmatprep.subr.mxu0 0.0
    %612 = vmatpush1.msra.mxu0 0.0
    %613 = vmatprep.subr.mxu0 0.0
    %614 = vmatpush1.msra.mxu0 0.0
    %615 = vmatprep.subr.mxu0 0.0
    %616 = vmatpush1.msra.mxu0 0.0
    %617 = vmatprep.subr.mxu0 0.0
    %618 = vmatpush1.msra.mxu0 0.0
    %619 = vmatprep.subr.mxu0 0.0
    %620 = vmatpush1.msra.mxu0 0.0
    %621 = vmatprep.subr.mxu0 0.0
    %622 = vmatpush1.msra.mxu0 0.0
    %623 = vmatprep.subr.mxu0 0.0
    %624 = vmatpush1.msra.mxu0 0.0
    %625 = vmatprep.subr.mxu0 0.0
    %626 = vmatpush1.msra.mxu0 0.0
    %627 = vmatprep.subr.mxu0 0.0
    %628 = vmatpush1.msra.mxu0 0.0
    %629 = vmatprep.subr.mxu0 0.0
    %630 = vmatpush1.msra.mxu0 0.0
    %631 = vmatprep.subr.mxu0 0.0
    %632 = vmatpush1.msra.mxu0 0.0
    %633 = vmatprep.subr.mxu0 0.0
    %634 = vmatpush1.msra.mxu0 0.0
    %635 = vmatprep.subr.mxu0 0.0
    %636 = vmatpush1.msra.mxu0 0.0
    %637 = vmatprep.subr.mxu0 0.0
    %638 = vmatpush1.msra.mxu0 0.0
    %639 = vmatprep.subr.mxu0 0.0
    %640 = vmatpush1.msra.mxu0 0.0
    %641 = vmatprep.subr.mxu0 0.0
    %642 = vmatpush1.msra.mxu0 0.0
    %643 = vmatprep.subr.mxu0 0.0
    %644 = vmatpush1.msra.mxu0 0.0
    %645 = vmatprep.subr.mxu0 0.0
    %646 = vmatpush1.msra.mxu0 0.0
    %647 = vmatprep.subr.mxu0 0.0
    %648 = vmatpush1.msra.mxu0 0.0
    %649 = vmatprep.subr.mxu0 0.0
    %650 = vmatpush1.msra.mxu0 0.0
    %651 = vmatprep.subr.mxu0 0.0
    %652 = vmatpush1.msra.mxu0 0.0
    %653 = vmatprep.subr.mxu0 0.0
    %654 = vmatpush1.msra.mxu0 0.0
    %655 = vmatprep.subr.mxu0 0.0
    %656 = vmatpush1.msra.mxu0 0.0
    %657 = vmatprep.subr.mxu0 0.0
    %658 = vmatpush1.msra.mxu0 0.0
    %659 = vmatprep.subr.mxu0 0.0
    %660 = vmatpush1.msra.mxu0 0.0
    %661 = vmatprep.mubr.f32.mxu0 0.0
    %662 = vmatmul.mubr.f32.gmra.mrb[0].mxu0 %v574
    %v663 = vpop.f32.mrb[0].mxu0
    %v664 = vadd.f32 0.0, %v663
    %v665 = vpop.f32.mrb[0].mxu0
    %666 = vmatprep.mubr.f32.mxu0 0.0
    %667 = vmatmul.mubr.f32.gmra.mrb[0].mxu0 %v577
    %v668 = vpop.f32.mrb[0].mxu0
    %v669 = vadd.f32 0.0, %v668
    %v670 = vpop.f32.mrb[0].mxu0
    %671 = vmatprep.mubr.f32.mxu0 0.0
    %672 = vmatmul.mubr.f32.gmra.mrb[0].mxu0 %v580
    %v673 = vpop.f32.mrb[0].mxu0
    %v674 = vadd.f32 0.0, %v673
    %v675 = vpop.f32.mrb[0].mxu0
    %676 = vmatprep.mubr.f32.mxu0 0.0
    %677 = vmatmul.mubr.f32.gmra.mrb[0].mxu0 %v583
    %v678 = vpop.f32.mrb[0].mxu0
    %v679 = vadd.f32 0.0, %v678
    %v680 = vpop.f32.mrb[0].mxu0
    %681 = vmatprep.mubr.f32.mxu0 0.0
    %682 = vmatmul.mubr.f32.gmra.mrb[0].mxu0 %v586
    %v683 = vpop.f32.mrb[0].mxu0
    %v684 = vadd.f32 0.0, %v683
    %v685 = vpop.f32.mrb[0].mxu0
    %686 = vmatprep.mubr.f32.mxu0 0.0
    %687 = vmatmul.mubr.f32.gmra.mrb[0].mxu0 %v589
    %v688 = vpop.f32.mrb[0].mxu0
    %v689 = vadd.f32 0.0, %v688
    %v690 = vpop.f32.mrb[0].mxu0
    %691 = vmatprep.mubr.f32.mxu0 0.0
    %692 = vmatmul.mubr.f32.gmra.mrb[0].mxu0 %v592
    %v693 = vpop.f32.mrb[0].mxu0
    %v694 = vadd.f32 0.0, %v693
    %v695 = vpop.f32.mrb[0].mxu0
    %696 = vmatprep.mubr.f32.mxu0 0.0
    %697 = vmatmul.mubr.f32.gmra.mrb[0].mxu0 %v595
    %v698 = vpop.f32.mrb[0].mxu0
    %v699 = vadd.f32 0.0, %v698
    %v700 = vpop.f32.mrb[0].mxu0
    %701 = vdwg.mxu0
    %702 = vst [vmem:[#allocation3] sm:$0xff] %v664
    %703 = vst [vmem:[#allocation3 + $0x8] sm:$0xff] %v669
    %704 = vst [vmem:[#allocation3 + $0x10] sm:$0xff] %v674
    %705 = vst [vmem:[#allocation3 + $0x18] sm:$0xff] %v679
    %706 = vst [vmem:[#allocation3 + $0x20] sm:$0xff] %v684
    %707 = vst [vmem:[#allocation3 + $0x28] sm:$0xff] %v689
    %708 = vst [vmem:[#allocation3 + $0x30] sm:$0xff] %v694
    %709 = vst [vmem:[#allocation3 + $0x38] sm:$0xff] %v699
    // Predicated region
    $region22: #{tpu_custom_call.1} parent=1 // pred_check
      _
    $region23: #{tpu_custom_call.1} parent=1 // pred_check_branch
      %711 = sbr.rel (0) target = $region25
    $region24: #{tpu_custom_call.1} parent=1 // pred_region
      %s713 = ssub.s32 1024, 1024
      %714 = vsyncadd [#allocation4], %s713
      %s715 = sshll.u32 [#allocation3], 4
      %s716 = int_to_ptr.vmem [resolvable:$true] %s715
      %721 = dma.vmem_to_hbm [thread:$0]  %s716, 1024, %s5, [#allocation4], 128, 128, 8
    $region25: #{tpu_custom_call.1} parent=1 // pred_fallthru
      _
    // Predicated region
    $region26: #{tpu_custom_call.1} parent=1 // pred_check
      _
    $region27: #{tpu_custom_call.1} parent=1 // pred_check_branch
      %723 = sbr.rel (0) target = $region29
    $region28: #{tpu_custom_call.1} parent=1 // pred_region
      %724 = dma.done [#allocation4], 1024
    $region29: #{tpu_custom_call.1} parent=1 // pred_fallthru
      _
    %725 = vsyncpa [#allocation4], 1

</llo_original>
